<compile_context>
chip_gen: v6e
topology: v6e:2x2x1
jax: 0.10.0
libtpu: 0.0.40
codegen_flags: <defaults>
</compile_context>

<pallas_src>
import functools

import jax
import jax.numpy as jnp
from jax.experimental import pallas as pl
from jax.experimental.pallas import tpu as pltpu

EPS = 1e-6


def _cdiv(a, b):
    return -(-a // b)


def _round_up(n, m):
    return _cdiv(n, m) * m


def _vmem_physical_bytes():
    # Generation-aware VMEM capacity (v5e/v6e: 128 MiB, v7x: 64 MiB per TC).
    try:
        return int(pltpu.get_tpu_info().vmem_capacity_bytes)
    except Exception:
        return 64 * 1024 * 1024  # conservative fallback (v7x per-TensorCore)


def _sublayer_connection_kernel(x_ref, w_ref, bias_ref, o_ref):
    # x_ref: (TM, D) [activation dtype]
    # w_ref: (D, D)  [bf16, LN gain a_2 pre-folded into the columns' rows]
    # bias_ref: (1, D) [f32, b_2 @ W + linear bias pre-folded]
    x = x_ref[...].astype(jnp.float32)
    n_feat = x.shape[-1]

    # --- LayerNorm core (torch-style: unbiased std, denom = std + eps) ---
    mean = jnp.mean(x, axis=-1, keepdims=True)
    centered = x - mean
    var_unbiased = jnp.sum(centered * centered, axis=-1, keepdims=True) / (n_feat - 1)
    std = jnp.sqrt(var_unbiased)
    # Reciprocal runs on the EUP (its own bundle slot); exact (approx=False)
    # keeps parity with the f32 reference at no cost while the kernel is
    # HBM-bandwidth bound.
    inv = pl.reciprocal(std + EPS, approx=False)          # (TM, 1)
    x_norm = centered * inv                                # affine folded into W / bias

    # --- sublayer: Linear(D, D) on the MXU, bf16 operands, f32 accumulate ---
    y = jnp.dot(
        x_norm.astype(w_ref.dtype), w_ref[...],
        preferred_element_type=jnp.float32,
    ) + bias_ref[...]

    # --- dropout (inference mode => identity) + residual ---
    # Re-read x from VMEM after the matmul so the f32 copy of x is not kept
    # live across the MXU call (smaller vreg live ranges).
    o_ref[...] = (x_ref[...].astype(jnp.float32) + y).astype(o_ref.dtype)


def sublayer_connection(x, w, bias, a_2, b_2, *, tm=1024, mxu_dtype=jnp.bfloat16):
    """out = x + Linear(LayerNorm(x)).  x: (B, S, D); w: (D, D); bias/a_2/b_2: (D,).

    Output keeps x.dtype — pass bf16 activations to halve the dominant HBM
    traffic of this memory-bound kernel. LayerNorm math is always f32 inside.
    """
    B, S, D = x.shape
    N = B * S
    x_itemsize = jnp.dtype(x.dtype).itemsize
    w_itemsize = jnp.dtype(mxu_dtype).itemsize

    # ---- row tiling -------------------------------------------------------
    # Pad rows only to a sublane multiple (8) and derive the tile count so:
    #  (a) tiles are near the requested tm to amortize the ~0.35 us/step
    #      fixed pipeline overhead,
    #  (b) there are >= 8 tiles whenever N allows it (>= 4 pipelined steps per
    #      TensorCore when the 'parallel' grid axis is sharded on v7x),
    #  (c) padding waste is bounded to < 8 rows per tile (not up to tm-1 rows).
    n8 = _round_up(N, 8)
    tm = max(8, _round_up(tm, 8))
    g = max(_cdiv(n8, tm), min(8, n8 // 8), 1)

    def _footprint(t):
        # double-buffered x + out tiles, f32 temporaries, resident weight/bias
        return (4 * t * D * x_itemsize + 4 * t * D * 4
                + 2 * D * D * w_itemsize + 2 * D * 4)

    vmem_budget = int(_vmem_physical_bytes() * 0.7)     # never exceed v7x's 64 MiB
    tm_eff = _round_up(_cdiv(n8, g), 8)
    while _footprint(tm_eff) > vmem_budget and tm_eff > 8:
        g *= 2
        tm_eff = _round_up(_cdiv(n8, g), 8)
    n_pad = g * tm_eff

    x2d = x.reshape(N, D)
    if n_pad != N:
        # Pad rows are row-independent through LN / matmul / residual and are
        # sliced off afterwards; they never contaminate real rows.
        x2d = jnp.pad(x2d, ((0, n_pad - N), (0, 0)))

    # Fold the LN affine and the linear bias into the matmul parameters
    # (exact in eval mode, done in f32 BEFORE the bf16 cast):
    #   a_2*(c/(std+eps)) @ W + b_2 @ W + b == (c/(std+eps)) @ (a_2[:,None]*W)
    #                                           + (b_2 @ W + b)
    w_f32 = w.astype(jnp.float32)
    w_fold = a_2.astype(jnp.float32)[:, None] * w_f32
    bias_fold = (b_2.astype(jnp.float32) @ w_f32
                 + bias.astype(jnp.float32)).reshape(1, D)
    w_mxu = w_fold.astype(mxu_dtype)

    # Raise the scoped VMEM limit only when the footprint exceeds the most
    # conservative default (16 MiB on v5e); cap below physical VMEM.
    vmem_bytes = _footprint(tm_eff)
    vmem_limit = None
    if vmem_bytes > 16 * 1024 * 1024:
        vmem_limit = min(int(vmem_bytes * 1.25), vmem_budget)

    cost = pl.CostEstimate(
        flops=2 * n_pad * D * D + 6 * n_pad * D,
        transcendentals=2 * n_pad,               # one sqrt + one reciprocal per row
        bytes_accessed=2 * n_pad * D * x_itemsize + D * D * w_itemsize + D * 4,
    )

    out2d = pl.pallas_call(
        _sublayer_connection_kernel,
        out_shape=jax.ShapeDtypeStruct((n_pad, D), x.dtype),
        grid_spec=pltpu.PrefetchScalarGridSpec(
            num_scalar_prefetch=0,
            grid=(g,),
            in_specs=[
                pl.BlockSpec((tm_eff, D), lambda i: (i, 0)),   # x (row-tiled)
                pl.BlockSpec((D, D), lambda i: (0, 0)),        # folded weight (resident)
                pl.BlockSpec((1, D), lambda i: (0, 0)),        # folded bias (resident)
            ],
            out_specs=pl.BlockSpec((tm_eff, D), lambda i: (i, 0)),
        ),
        compiler_params=pltpu.CompilerParams(
            dimension_semantics=("parallel",),   # independent row tiles; v7x 2-TC
            vmem_limit_bytes=vmem_limit,
        ),
        cost_estimate=cost,
    )(x2d, w_mxu, bias_fold)

    if n_pad != N:
        out2d = out2d[:N]
    return out2d.reshape(B, S, D)


def _reference(x, w, bias, a_2, b_2):
    """Pure-JAX reference mirroring the PyTorch forward (eval mode, f32 math)."""
    xf = x.astype(jnp.float32)
    mean = jnp.mean(xf, axis=-1, keepdims=True)
    std = jnp.sqrt(
        jnp.sum((xf - mean) ** 2, axis=-1, keepdims=True) / (xf.shape[-1] - 1)
    )
    xn = a_2 * (xf - mean) / (std + EPS) + b_2
    y = xn @ w.astype(jnp.float32) + bias
    return (xf + y).astype(x.dtype)


if __name__ == "__main__":
    key = jax.random.PRNGKey(0)
    k_x, k_w, k_b = jax.random.split(key, 3)

    # Small but lane-dense shapes: D a multiple of 128, enough rows (N=128) so
    # the auto-tiler builds an 8-tile 'parallel' grid.
    B, S, D = 2, 64, 128

    x = jax.random.normal(k_x, (B, S, D), dtype=jnp.float32)

    # LayerNorm params per module __init__: a_2 = ones(size), b_2 = zeros(size)
    a_2 = jnp.ones((D,), dtype=jnp.float32)
    b_2 = jnp.zeros((D,), dtype=jnp.float32)

    # Deterministic sublayer (Linear(D, D)) params
    w = jax.random.normal(k_w, (D, D), dtype=jnp.float32) * 0.02
    bias = jax.random.normal(k_b, (D,), dtype=jnp.float32) * 0.02

    fn = functools.partial(sublayer_connection, tm=1024)

    # --- f32 activations (tight check; error budget = bf16 MXU operands) ---
    out = jax.block_until_ready(fn(x, w, bias, a_2, b_2))
    ref = _reference(x, w, bias, a_2, b_2)
    assert out.shape == (B, S, D)
    err = jnp.max(jnp.abs(out - ref))
    assert jnp.allclose(out, ref, atol=2e-2, rtol=2e-2), (
        f"f32 mismatch vs reference (max abs err {err})")

    # --- bf16 activations (the mem-bound fast path: half the HBM traffic) ---
    x_bf = x.astype(jnp.bfloat16)
    out_bf = jax.block_until_ready(fn(x_bf, w, bias, a_2, b_2))
    ref_bf = _reference(x_bf, w, bias, a_2, b_2)
    assert out_bf.dtype == jnp.bfloat16 and out_bf.shape == (B, S, D)
    err_bf = jnp.max(jnp.abs(out_bf.astype(jnp.float32) - ref_bf.astype(jnp.float32)))
    assert jnp.allclose(out_bf.astype(jnp.float32), ref_bf.astype(jnp.float32),
                        atol=1e-1, rtol=5e-2), (
        f"bf16 mismatch vs reference (max abs err {err_bf})")

    print("KERNEL_OK")
</pallas_src>

<mosaic_0001>
module attributes {stable_mosaic.version = 11 : i64} {
  func.func @_sublayer_connection_kernel(%arg0: i32, %arg1: memref<16x128xf32, #tpu.memory_space<vmem>>, %arg2: memref<128x128xbf16, #tpu.memory_space<vmem>>, %arg3: memref<1x128xf32, #tpu.memory_space<vmem>>, %arg4: memref<16x128xf32, #tpu.memory_space<vmem>>) attributes {dimension_semantics = [#tpu.dimension_semantics<parallel>], iteration_bounds = array<i64: 8>, scalar_prefetch = 0 : i64, scratch_operands = 0 : i64, tpu.core_type = #tpu.core_type<tc>, window_params = [{transform_indices = @transform_0, window_bounds = array<i64: 16, 128>}, {pipeline_mode = #tpu.pipeline_mode<synchronous>, transform_indices = @transform_1, window_bounds = array<i64: 128, 128>}, {pipeline_mode = #tpu.pipeline_mode<synchronous>, transform_indices = @transform_2, window_bounds = array<i64: 1, 128>}, {transform_indices = @transform_3, window_bounds = array<i64: 16, 128>}]} {
    %c0 = arith.constant 0 : index
    %c0_0 = arith.constant 0 : index
    %0 = vector.load %arg1[%c0, %c0_0] : memref<16x128xf32, #tpu.memory_space<vmem>>, vector<16x128xf32>
    %cst = arith.constant dense<0.000000e+00> : vector<16xf32>
    %1 = vector.multi_reduction <add>, %0, %cst [1] : vector<16x128xf32> to vector<16xf32>
    %2 = vector.shape_cast %1 : vector<16xf32> to vector<16x1xf32>
    %cst_1 = arith.constant 1.280000e+02 : f32
    %3 = vector.broadcast %cst_1 : f32 to vector<16x1xf32>
    %4 = arith.divf %2, %3 : vector<16x1xf32>
    %5 = vector.broadcast %4 : vector<16x1xf32> to vector<16x128xf32>
    %6 = arith.subf %0, %5 : vector<16x128xf32>
    %7 = arith.mulf %6, %6 : vector<16x128xf32>
    %cst_2 = arith.constant dense<0.000000e+00> : vector<16xf32>
    %8 = vector.multi_reduction <add>, %7, %cst_2 [1] : vector<16x128xf32> to vector<16xf32>
    %9 = vector.shape_cast %8 : vector<16xf32> to vector<16x1xf32>
    %cst_3 = arith.constant 1.270000e+02 : f32
    %10 = vector.broadcast %cst_3 : f32 to vector<16x1xf32>
    %11 = arith.divf %9, %10 : vector<16x1xf32>
    %12 = math.sqrt %11 : vector<16x1xf32>
    %cst_4 = arith.constant 9.99999997E-7 : f32
    %13 = vector.broadcast %cst_4 : f32 to vector<16x1xf32>
    %14 = arith.addf %12, %13 : vector<16x1xf32>
    %15 = tpu.reciprocal %14 : vector<16x1xf32> -> vector<16x1xf32>
    %16 = vector.broadcast %15 : vector<16x1xf32> to vector<16x128xf32>
    %17 = arith.mulf %6, %16 : vector<16x128xf32>
    %18 = arith.truncf %17 : vector<16x128xf32> to vector<16x128xbf16>
    %c0_5 = arith.constant 0 : index
    %c0_6 = arith.constant 0 : index
    %19 = vector.load %arg2[%c0_5, %c0_6] : memref<128x128xbf16, #tpu.memory_space<vmem>>, vector<128x128xbf16>
    %cst_7 = arith.constant dense<0.000000e+00> : vector<16x128xf32>
    %20 = tpu.matmul %18, %19, %cst_7 {dimension_numbers = #tpu.dot_dimension_numbers<[1], [0], [0], [1], [0, 0, 1, 1], [], []>} : vector<16x128xbf16>, vector<128x128xbf16>, vector<16x128xf32> -> vector<16x128xf32>
    %c0_8 = arith.constant 0 : index
    %c0_9 = arith.constant 0 : index
    %21 = vector.load %arg3[%c0_8, %c0_9] : memref<1x128xf32, #tpu.memory_space<vmem>>, vector<1x128xf32>
    %22 = vector.broadcast %21 : vector<1x128xf32> to vector<16x128xf32>
    %23 = arith.addf %20, %22 : vector<16x128xf32>
    %c0_10 = arith.constant 0 : index
    %c0_11 = arith.constant 0 : index
    %24 = vector.load %arg1[%c0_10, %c0_11] : memref<16x128xf32, #tpu.memory_space<vmem>>, vector<16x128xf32>
    %25 = arith.addf %24, %23 : vector<16x128xf32>
    %c0_12 = arith.constant 0 : index
    %c0_13 = arith.constant 0 : index
    %26 = vector.load %arg4[%c0_12, %c0_13] : memref<16x128xf32, #tpu.memory_space<vmem>>, vector<16x128xf32>
    tpu.vector_store %arg4[%c0_12, %c0_13], %25 {strides = array<i32>} : memref<16x128xf32, #tpu.memory_space<vmem>>, vector<16x128xf32>,
    return
  }
  func.func @transform_0(%arg0: i32) -> (i32, i32) {
    %c0_i32 = arith.constant 0 : i32
    %c0_i32_0 = arith.constant 0 : i32
    return %arg0, %c0_i32 : i32, i32
  }
  func.func @transform_1(%arg0: i32) -> (i32, i32) {
    %c0_i32 = arith.constant 0 : i32
    %c0_i32_0 = arith.constant 0 : i32
    %c0_i32_1 = arith.constant 0 : i32
    return %c0_i32, %c0_i32_0 : i32, i32
  }
  func.func @transform_2(%arg0: i32) -> (i32, i32) {
    %c0_i32 = arith.constant 0 : i32
    %c0_i32_0 = arith.constant 0 : i32
    %c0_i32_1 = arith.constant 0 : i32
    return %c0_i32, %c0_i32_0 : i32, i32
  }
  func.func @transform_3(%arg0: i32) -> (i32, i32) {
    %c0_i32 = arith.constant 0 : i32
    %c0_i32_0 = arith.constant 0 : i32
    return %arg0, %c0_i32 : i32, i32
  }
}

</mosaic_0001>

<llo_original>
// kernel: tpu_custom_call.1
$region0: #{tpu_custom_call.1}
  #allocation0 [shape = 'u32[]', space=smem, size = 0x4, offset = 0x4, fixed_abs, tag = 'smem constant byte address 0x4 - core index']
  #allocation1 [shape = 'u32[144,128]{1,0:T(1,128)}', space=vmem, size = 0x12000, scoped, tag = 'internal scratch']
  %s0 = inlined_call_operand.hbm [shape: f32[128,128], index: 0, kind: input, shape index: {}]
  %s1 = inlined_call_operand.hbm [shape: bf16[128,128], index: 1, kind: input, shape index: {}]
  %s2 = inlined_call_operand.vmem [shape: f32[1,128], index: 2, kind: input, shape index: {}]
  %s3 = inlined_call_operand.hbm [shape: f32[128,128], index: 3, kind: output, shape index: {}]
  %s4 = sld [smem:[#allocation0]]
  $region53: #{tpu_custom_call.1} parent=0
    _
  %s6 = ssub.s32 1, %s4
  %s7 = scalar_select 0, %s6, %s4
  $region1: #{tpu_custom_call.1} parent=0
    #allocation2 [shape = 'u8[16384]{0}', space=vmem, size = 0x4000, scoped, tag = 'input window, operand 0']
    #allocation3 [shape = 's32[2]{0}', space=sflag, size = 0x8, scoped, tag = 'scoped memory for tpu_custom_call.1']
    #allocation4 [shape = 's32[2]{0}', space=sflag, size = 0x8, scoped, tag = 'scoped memory for tpu_custom_call.1']
    #allocation5 [shape = 'u8[32768]{0}', space=vmem, size = 0x8000, scoped, tag = 'input window, operand 1, single buffered']
    #allocation6 [shape = 's32[1]{0}', space=sflag, size = 0x4, scoped, tag = 'scoped memory for tpu_custom_call.1']
    #allocation7 [shape = 'u8[16384]{0}', space=vmem, size = 0x4000, scoped, tag = 'output window, operand 0']
    %8 = vsyncpa [#allocation3], 0
    %s9 = scalar_lea.sflag [#allocation3], 1
    %10 = vsyncpa %s9, 0
    %11 = vsyncpa [#allocation6], 0
    %12 = vsyncpa [#allocation4], 0
    %s13 = scalar_lea.sflag [#allocation4], 1
    %14 = vsyncpa %s13, 0
    loop: start=0, step=1, limit=10
    $region2: #{tpu_custom_call.1} parent=1 // loop_pre_header
      _
    $region3: #{tpu_custom_call.1} parent=1 // loop_header
      %s16 = sphi 0, %s20
      %p17 = scmp.ge.s32.totalorder %s16, 10
      %s26 = sphi 0, %s28
      %s29 = sphi 0, %s26
      %s30 = sphi 0, %s29
      %s46 = sphi 0, %s30
      %s50 = sphi 0, %s50
      %s52 = sphi 0, %s50
      %s53 = sphi 0, %s52
      %s67 = sphi 0, %s53
      %s71 = sphi 0, %s71
      %s73 = sphi 0, %s71
      %s74 = sphi 0, %s73
      %s88 = sphi 0, %s74
      %s94 = sphi 0, %s96
      %s97 = sphi 0, %s94
      %s98 = sphi 0, %s97
      %s114 = sphi 0, %s98
    $region4: #{tpu_custom_call.1} parent=1 // loop_header_branch
      %19 = sbr.rel (%p17) target = $region8
    $region5: #{tpu_custom_call.1} parent=1 // loop_body
      %s21 = ssub.s32 %s16, 1
      %s22 = ssub.s32 %s16, 2
      %s23 = sadd.s32 %s16, 1
      %s24 = ssub.s32 %s16, %s23
      %p25 = scmp.eq.s32.totalorder %s24, 0
      %s27 = sadd.s32 %s26, 1
      %s28 = scalar_select %p25, %s26, %s27
      %p31 = pneg %p25
      %p32 = scmp.eq.s32.totalorder %s16, 7
      %p33 = por %p31, %p32
      %p34 = scmp.ne.s32.totalorder %s26, %s29
      %p35 = scmp.eq.s32.totalorder %s16, 0
      %p36 = por %p34, %p35
      %p37 = scmp.ne.s32.totalorder %s26, %s29
      %p38 = scmp.eq.s32.totalorder %s21, 7
      %p39 = por %p37, %p38
      %p40 = scmp.ne.s32.totalorder %s29, %s30
      %p41 = scmp.eq.s32.totalorder %s21, 0
      %p42 = por %p40, %p41
      %p43 = scmp.ne.s32.totalorder %s29, %s30
      %p44 = scmp.eq.s32.totalorder %s22, 7
      %p45 = por %p43, %p44
      %p47 = scmp.ne.s32.totalorder %s30, %s46
      %p48 = scmp.eq.s32.totalorder %s22, 0
      %p49 = por %p47, %p48
      %s51 = sadd.s32 %s50, 1
      %p54 = scmp.eq.s32.totalorder %s16, 7
      %p55 = scmp.ne.s32.totalorder %s50, %s52
      %p56 = scmp.eq.s32.totalorder %s16, 0
      %p57 = por %p55, %p56
      %p58 = scmp.ne.s32.totalorder %s50, %s52
      %p59 = scmp.eq.s32.totalorder %s21, 7
      %p60 = por %p58, %p59
      %p61 = scmp.ne.s32.totalorder %s52, %s53
      %p62 = scmp.eq.s32.totalorder %s21, 0
      %p63 = por %p61, %p62
      %p64 = scmp.ne.s32.totalorder %s52, %s53
      %p65 = scmp.eq.s32.totalorder %s22, 7
      %p66 = por %p64, %p65
      %p68 = scmp.ne.s32.totalorder %s53, %s67
      %p69 = scmp.eq.s32.totalorder %s22, 0
      %p70 = por %p68, %p69
      %s72 = sadd.s32 %s71, 1
      %p75 = scmp.eq.s32.totalorder %s16, 7
      %p76 = scmp.ne.s32.totalorder %s71, %s73
      %p77 = scmp.eq.s32.totalorder %s16, 0
      %p78 = por %p76, %p77
      %p79 = scmp.ne.s32.totalorder %s71, %s73
      %p80 = scmp.eq.s32.totalorder %s21, 7
      %p81 = por %p79, %p80
      %p82 = scmp.ne.s32.totalorder %s73, %s74
      %p83 = scmp.eq.s32.totalorder %s21, 0
      %p84 = por %p82, %p83
      %p85 = scmp.ne.s32.totalorder %s73, %s74
      %p86 = scmp.eq.s32.totalorder %s22, 7
      %p87 = por %p85, %p86
      %p89 = scmp.ne.s32.totalorder %s74, %s88
      %p90 = scmp.eq.s32.totalorder %s22, 0
      %p91 = por %p89, %p90
      %s92 = ssub.s32 %s16, %s23
      %p93 = scmp.eq.s32.totalorder %s92, 0
      %s95 = sadd.s32 %s94, 1
      %s96 = scalar_select %p93, %s94, %s95
      %p99 = pneg %p93
      %p100 = scmp.eq.s32.totalorder %s16, 7
      %p101 = por %p99, %p100
      %p102 = scmp.ne.s32.totalorder %s94, %s97
      %p103 = scmp.eq.s32.totalorder %s16, 0
      %p104 = por %p102, %p103
      %p105 = scmp.ne.s32.totalorder %s94, %s97
      %p106 = scmp.eq.s32.totalorder %s21, 7
      %p107 = por %p105, %p106
      %p108 = scmp.ne.s32.totalorder %s97, %s98
      %p109 = scmp.eq.s32.totalorder %s21, 0
      %p110 = por %p108, %p109
      %p111 = scmp.ne.s32.totalorder %s97, %s98
      %p112 = scmp.eq.s32.totalorder %s22, 7
      %p113 = por %p111, %p112
      %p115 = scmp.ne.s32.totalorder %s98, %s114
      %p116 = scmp.eq.s32.totalorder %s22, 0
      %p117 = por %p115, %p116
      %p118 = scmp.le.s32.totalorder 1, %s16
      %p119 = scmp.lt.s32.totalorder %s16, 9
      %p120 = pnand %p118, %p119
      %p121 = pneg %p120
      // Predicated region
      $region9: #{tpu_custom_call.1} parent=5 // pred_check
        _
      $region10: #{tpu_custom_call.1} parent=5 // pred_check_branch
        %123 = sbr.rel (%p120) target = $region12
      $region11: #{tpu_custom_call.1} parent=5 // pred_region
        %s124 = ssub.s32 %s16, 1
        // Predicated region
        $region13: #{tpu_custom_call.1} parent=11 // pred_check
          %p125 = pneg %p63
        $region14: #{tpu_custom_call.1} parent=11 // pred_check_branch
          %127 = sbr.rel (%p125) target = $region16
        $region15: #{tpu_custom_call.1} parent=11 // pred_region
          %s129 = ssub.s32 1024, 1024
          %130 = vsyncadd [#allocation6], %s129
          %s131 = sshll.u32 [#allocation5], 4
          %s132 = int_to_ptr.vmem [resolvable:$true] %s131
          %137 = dma.hbm_to_vmem [thread:$0]  %s1, 1024, %s132, [#allocation6], 64, 64, 4
        $region16: #{tpu_custom_call.1} parent=11 // pred_fallthru
          _
        // Predicated region
        $region17: #{tpu_custom_call.1} parent=11 // pred_check
          %p138 = pneg %p84
        $region18: #{tpu_custom_call.1} parent=11 // pred_check_branch
          %140 = sbr.rel (%p138) target = $region20
        $region19: #{tpu_custom_call.1} parent=11 // pred_region
          _
        $region20: #{tpu_custom_call.1} parent=11 // pred_fallthru
          _
      $region12: #{tpu_custom_call.1} parent=5 // pred_fallthru
        _
      %p141 = scmp.lt.s32.totalorder %s16, 8
      // Predicated region
      $region21: #{tpu_custom_call.1} parent=5 // pred_check
        %p142 = pneg %p141
      $region22: #{tpu_custom_call.1} parent=5 // pred_check_branch
        %144 = sbr.rel (%p142) target = $region24
      $region23: #{tpu_custom_call.1} parent=5 // pred_region
        // Predicated region
        $region25: #{tpu_custom_call.1} parent=23 // pred_check
          %p145 = pneg %p36
        $region26: #{tpu_custom_call.1} parent=23 // pred_check_branch
          %147 = sbr.rel (%p145) target = $region28
        $region27: #{tpu_custom_call.1} parent=23 // pred_region
          %s148 = sand.u32 %s26, 1
          %s149 = scalar_lea.sflag [#allocation3], %s148
          %s150 = sand.u32 %s26, 1
          %s151 = smul.addr %s150, 16
          %s152 = scalar_lea.vmem [#allocation2], %s151
          %s153 = smul.u32 2, %s16
          %s155 = ssub.s32 256, 256
          %156 = vsyncadd %s149, %s155
          %s157 = smul.addr %s153, 128
          %s158 = scalar_lea.hbm %s0, %s157
          %s159 = sshll.u32 %s152, 4
          %s160 = int_to_ptr.vmem [resolvable:$true] %s159
          %165 = dma.hbm_to_vmem [thread:$0]  %s158, 256, %s160, %s149, 128, 128, 8
        $region28: #{tpu_custom_call.1} parent=23 // pred_fallthru
          _
      $region24: #{tpu_custom_call.1} parent=5 // pred_fallthru
        _
      %p166 = scmp.le.s32.totalorder 1, %s16
      %p167 = scmp.lt.s32.totalorder %s16, 9
      %p168 = pnand %p166, %p167
      %p169 = pneg %p168
      // Predicated region
      $region29: #{tpu_custom_call.1} parent=5 // pred_check
        _
      $region30: #{tpu_custom_call.1} parent=5 // pred_check_branch
        %171 = sbr.rel (%p168) target = $region32
      $region31: #{tpu_custom_call.1} parent=5 // pred_region
        %s172 = ssub.s32 %s16, 1
        %s173 = sand.u32 %s29, 1
        %s174 = scalar_lea.sflag [#allocation3], %s173
        %s175 = sand.u32 %s29, 1
        %s176 = smul.addr %s175, 16
        %s177 = scalar_lea.vmem [#allocation2], %s176
        // Predicated region
        $region33: #{tpu_custom_call.1} parent=31 // pred_check
          %p178 = pneg %p42
        $region34: #{tpu_custom_call.1} parent=31 // pred_check_branch
          %180 = sbr.rel (%p178) target = $region36
        $region35: #{tpu_custom_call.1} parent=31 // pred_region
          %181 = dma.done %s174, 256
        $region36: #{tpu_custom_call.1} parent=31 // pred_fallthru
          _
        // Predicated region
        $region37: #{tpu_custom_call.1} parent=31 // pred_check
          %p182 = pneg %p63
        $region38: #{tpu_custom_call.1} parent=31 // pred_check_branch
          %184 = sbr.rel (%p182) target = $region40
        $region39: #{tpu_custom_call.1} parent=31 // pred_region
          %185 = dma.done [#allocation6], 1024
        $region40: #{tpu_custom_call.1} parent=31 // pred_fallthru
          _
        %s186 = sand.u32 %s29, 1
        %s187 = scalar_lea.sflag [#allocation3], %s186
        %s188 = sand.u32 %s29, 1
        %s189 = smul.addr %s188, 16
        %s190 = scalar_lea.vmem [#allocation2], %s189
        %p191 = pneg %p42
        %p192 = pneg %p39
        %p193 = pneg %p63
        %p194 = pneg %p60
        %p195 = pneg %p84
        %p196 = pneg %p81
        %p197 = pneg %p110
        %p198 = pneg %p107
        %s199 = sand.u32 %s97, 1
        %s200 = scalar_lea.sflag [#allocation4], %s199
        %s201 = sand.u32 %s97, 1
        %s202 = smul.addr %s201, 16
        %s203 = scalar_lea.vmem [#allocation7], %s202
        %s204 = smul.u32 2, %s21
        %s205 = smul.u32 2, %s21
        %v207 = vld [vmem:[%s177] sm:$0xff]
        %v208 = vld [vmem:[%s177 + $0x8] sm:$0xff]
        %209 = vadd.xlane.f32.xlu0 %v207
        %v210 = vpop.xlane.xlu0 %209
        %211 = vadd.xlane.f32.xlu0 %v208
        %v212 = vpop.xlane.xlu0 %211
        %v213 = vrcp.pop 128.0
        %v214 = vmul.f32 %v210, %v213
        %v215 = vmul.f32 %v212, %v213
        %v216 = vsub.f32 %v207, %v214
        %v217 = vsub.f32 %v208, %v215
        %v218 = vmul.f32 %v216, %v216
        %v219 = vmul.f32 %v217, %v217
        %220 = vadd.xlane.f32.xlu0 %v218
        %v221 = vpop.xlane.xlu0 %220
        %222 = vadd.xlane.f32.xlu0 %v219
        %v223 = vpop.xlane.xlu0 %222
        %v224 = vrcp.pop 127.0
        %v225 = vmul.f32 %v221, %v224
        %v226 = vmul.f32 %v223, %v224
        %v227 = vrsqrt.pop %v225
        %v228 = vmul.f32 %v225, %v227
        %vm229 = vcmp.eq.f32.partialorder %v225, inf
        %v230 = vsel %vm229, %v225, %v228
        %vm231 = vcmp.eq.f32.partialorder %v225, 0.0
        %v232 = vand.u32 %v225, 2147483648
        %v233 = vsel %vm231, %v232, %v230
        %v234 = vrsqrt.pop %v226
        %v235 = vmul.f32 %v226, %v234
        %vm236 = vcmp.eq.f32.partialorder %v226, inf
        %v237 = vsel %vm236, %v226, %v235
        %vm238 = vcmp.eq.f32.partialorder %v226, 0.0
        %v239 = vand.u32 %v226, 2147483648
        %v240 = vsel %vm238, %v239, %v237
        %v241 = vadd.f32 %v233, 1e-06
        %v242 = vadd.f32 %v240, 1e-06
        %v243 = vrcp.pop %v241
        %v244 = vrcp.pop %v242
        %v245 = vmul.f32 %v216, %v243
        %v246 = vmul.f32 %v217, %v244
        %v247 = vpack.c.bf16 %v246, %v245
        %v248 = vld [vmem:[#allocation5] sm:$0xf]
        %v249 = vld [vmem:[#allocation5 + $0x4] sm:$0xf]
        %v250 = vld [vmem:[#allocation5 + $0x8] sm:$0xf]
        %v251 = vld [vmem:[#allocation5 + $0xc] sm:$0xf]
        %v252 = vld [vmem:[#allocation5 + $0x10] sm:$0xf]
        %v253 = vld [vmem:[#allocation5 + $0x14] sm:$0xf]
        %v254 = vld [vmem:[#allocation5 + $0x18] sm:$0xf]
        %v255 = vld [vmem:[#allocation5 + $0x1c] sm:$0xf]
        %v256 = vld [vmem:[#allocation5 + $0x20] sm:$0xf]
        %v257 = vld [vmem:[#allocation5 + $0x24] sm:$0xf]
        %v258 = vld [vmem:[#allocation5 + $0x28] sm:$0xf]
        %v259 = vld [vmem:[#allocation5 + $0x2c] sm:$0xf]
        %v260 = vld [vmem:[#allocation5 + $0x30] sm:$0xf]
        %v261 = vld [vmem:[#allocation5 + $0x34] sm:$0xf]
        %v262 = vld [vmem:[#allocation5 + $0x38] sm:$0xf]
        %v263 = vld [vmem:[#allocation5 + $0x3c] sm:$0xf]
        %v264 = vld [vmem:[%s2] sm:$0x1]
        %v266 = vlaneseq
        %v267 = vshrl.u32 %v266, 7
        %v268 = vsub.s32 0, %v267
        %v269 = vrot.slane %v264, %v268
        %v287 = vunpack.c.l.b16 %v248
        %v288 = vunpack.c.l.b16 %v249
        %v289 = vunpack.c.l.b16 %v250
        %v290 = vunpack.c.l.b16 %v251
        %v291 = vunpack.c.l.b16 %v252
        %v292 = vunpack.c.l.b16 %v253
        %v293 = vunpack.c.l.b16 %v254
        %v294 = vunpack.c.l.b16 %v255
        %v295 = vunpack.c.l.b16 %v256
        %v296 = vunpack.c.l.b16 %v257
        %v297 = vunpack.c.l.b16 %v258
        %v298 = vunpack.c.l.b16 %v259
        %v299 = vunpack.c.l.b16 %v260
        %v300 = vunpack.c.l.b16 %v261
        %v301 = vunpack.c.l.b16 %v262
        %v302 = vunpack.c.l.b16 %v263
        %v303 = vpack.c.b16 %v288, %v287
        %v304 = vpack.c.b16 %v290, %v289
        %v305 = vpack.c.b16 %v292, %v291
        %v306 = vpack.c.b16 %v294, %v293
        %v307 = vpack.c.b16 %v296, %v295
        %v308 = vpack.c.b16 %v298, %v297
        %v309 = vpack.c.b16 %v300, %v299
        %v310 = vpack.c.b16 %v302, %v301
        %319 = vmatprep.subr.bf16.mxu0 0
        %320 = vmatpush1.bf16.msra.mxu0 %v310
        %321 = vmatprep.subr.bf16.mxu0 0
        %322 = vmatpush1.bf16.msra.mxu0 %v309
        %323 = vmatprep.subr.bf16.mxu0 0
        %324 = vmatpush1.bf16.msra.mxu0 %v308
        %325 = vmatprep.subr.bf16.mxu0 0
        %326 = vmatpush1.bf16.msra.mxu0 %v307
        %327 = vmatprep.subr.bf16.mxu0 0
        %328 = vmatpush1.bf16.msra.mxu0 %v306
        %329 = vmatprep.subr.bf16.mxu0 0
        %330 = vmatpush1.bf16.msra.mxu0 %v305
        %331 = vmatprep.subr.bf16.mxu0 0
        %332 = vmatpush1.bf16.msra.mxu0 %v304
        %333 = vmatprep.subr.bf16.mxu0 0
        %334 = vmatpush1.bf16.msra.mxu0 %v303
        %335 = vmatprep.subr.bf16.mxu0 0
        %336 = vmatpush2.bf16.msra.mxu0 0
        %337 = vmatprep.subr.bf16.mxu0 0
        %338 = vmatpush2.bf16.msra.mxu0 0
        %339 = vmatprep.subr.bf16.mxu0 0
        %340 = vmatpush2.bf16.msra.mxu0 0
        %341 = vmatprep.subr.bf16.mxu0 0
        %342 = vmatpush2.bf16.msra.mxu0 0
        %343 = vmatprep.subr.bf16.mxu0 0
        %344 = vmatpush2.bf16.msra.mxu0 0
        %345 = vmatprep.subr.bf16.mxu0 0
        %346 = vmatpush2.bf16.msra.mxu0 0
        %347 = vmatprep.subr.bf16.mxu0 0
        %348 = vmatpush2.bf16.msra.mxu0 0
        %349 = vmatprep.subr.bf16.mxu0 0
        %350 = vmatpush2.bf16.msra.mxu0 0
        %351 = vmatprep.mubr.bf16.mxu0 0
        %352 = vmatmul.mubr.bf16.gmra.mxu0 %v247
        %v353 = vpop.f32.mrf.mxu0
        %v354 = vadd.f32 %v269, %v353
        %v355 = vpop.f32.mrf.mxu0
        %v356 = vpop.f32.mrf.mxu0
        %v357 = vadd.f32 %v269, %v356
        %v358 = vpop.f32.mrf.mxu0
        %359 = vdwg.mxu0
        %v360 = vadd.f32 %v207, %v354
        %v361 = vadd.f32 %v208, %v357
        %362 = vst [vmem:[%s203] sm:$0xff] %v360
        %363 = vst [vmem:[%s203 + $0x8] sm:$0xff] %v361
        %s364 = sand.u32 %s97, 1
        %s365 = scalar_lea.sflag [#allocation4], %s364
        %s366 = sand.u32 %s97, 1
        %s367 = smul.addr %s366, 16
        %s368 = scalar_lea.vmem [#allocation7], %s367
        // Predicated region
        $region41: #{tpu_custom_call.1} parent=31 // pred_check
          %p369 = pneg %p107
        $region42: #{tpu_custom_call.1} parent=31 // pred_check_branch
          %371 = sbr.rel (%p369) target = $region44
        $region43: #{tpu_custom_call.1} parent=31 // pred_region
          %s372 = smul.u32 2, %s21
          %s374 = ssub.s32 256, 256
          %375 = vsyncadd %s365, %s374
          %s376 = smul.addr %s372, 128
          %s377 = scalar_lea.hbm %s3, %s376
          %s378 = sshll.u32 %s368, 4
          %s379 = int_to_ptr.vmem [resolvable:$true] %s378
          %384 = dma.vmem_to_hbm [thread:$0]  %s379, 256, %s377, %s365, 128, 128, 8
        $region44: #{tpu_custom_call.1} parent=31 // pred_fallthru
          _
      $region32: #{tpu_custom_call.1} parent=5 // pred_fallthru
        _
      %p385 = scmp.le.s32.totalorder 2, %s16
      // Predicated region
      $region45: #{tpu_custom_call.1} parent=5 // pred_check
        %p386 = pneg %p385
      $region46: #{tpu_custom_call.1} parent=5 // pred_check_branch
        %388 = sbr.rel (%p386) target = $region48
      $region47: #{tpu_custom_call.1} parent=5 // pred_region
        %s389 = ssub.s32 %s16, 2
        // Predicated region
        $region49: #{tpu_custom_call.1} parent=47 // pred_check
          %p390 = pneg %p113
        $region50: #{tpu_custom_call.1} parent=47 // pred_check_branch
          %392 = sbr.rel (%p390) target = $region52
        $region51: #{tpu_custom_call.1} parent=47 // pred_region
          %s393 = sand.u32 %s98, 1
          %s394 = scalar_lea.sflag [#allocation4], %s393
          %s395 = sand.u32 %s98, 1
          %s396 = smul.addr %s395, 16
          %s397 = scalar_lea.vmem [#allocation7], %s396
          %398 = dma.done %s394, 256
        $region52: #{tpu_custom_call.1} parent=47 // pred_fallthru
          _
      $region48: #{tpu_custom_call.1} parent=5 // pred_fallthru
        _
    $region6: #{tpu_custom_call.1} parent=1 // loop_footer
      %s20 = sadd.s32 1, %s16
    $region7: #{tpu_custom_call.1} parent=1 // loop_footer_branch
      %15 = sbr.rel target = $region3
    $region8: #{tpu_custom_call.1} parent=1 // loop_exit
      _
    %399 = vsyncpa [#allocation3], 1
    %s400 = scalar_lea.sflag [#allocation3], 1
    %401 = vsyncpa %s400, 1
    %402 = vsyncpa [#allocation6], 1
    %403 = vsyncpa [#allocation4], 1
    %s404 = scalar_lea.sflag [#allocation4], 1
    %405 = vsyncpa %s404, 1

</llo_original>
